<compile_context>
chip_gen: v5e
topology: v5e:2x2
jax: 0.10.0
libtpu: 0.0.40
codegen_flags: <defaults>
</compile_context>

<pallas_src>
import functools

import numpy as np
import jax
import jax.numpy as jnp
from jax.experimental import pallas as pl
from jax.experimental.pallas import tpu as pltpu

K = 11          # number of histogram centers ('ct' init)
EPS = 1e-10
LANES = 128


def _round_up(x, m):
    return ((x + m - 1) // m) * m


def _hist_kernel(x_ref, o_ref, *scratch, weights, biases, normalize, refine):
    # x_ref: VMEM f32[1, tm, 128]      o_ref: VMEM [1, K, tm, 128]
    # scratch (normalize=True only): ch_ref f32[K, tm, 128], sum_ref f32[tm, 128]
    x = x_ref[0]

    def sech(z):
        # sech(z) = 2*e / (1 + e^2), e = exp(-|z|): single EUP exp, overflow-free.
        e = jnp.exp(-jnp.abs(z))
        den = 1.0 + e * e
        r = pl.reciprocal(den, approx=True)
        if refine:                       # only needed for f32-accurate output
            r = r * (2.0 - den * r)      # one Newton step (VALU)
        return (2.0 * e) * r

    if not normalize:
        for k in range(K):               # static unroll over the 11 channels
            o_ref[0, k] = sech(x * weights[k] + biases[k]).astype(o_ref.dtype)
        return

    ch_ref, sum_ref = scratch
    sum_ref[...] = jnp.zeros_like(sum_ref)
    for k in range(K):
        ch = sech(x * weights[k] + biases[k])
        ch_ref[k] = ch                   # keep channels in f32 until normalized
        sum_ref[...] = sum_ref[...] + ch
    den = sum_ref[...] + EPS
    inv = pl.reciprocal(den, approx=True)
    if refine:
        inv = inv * (2.0 - den * inv)
    for k in range(K):                   # matches module: (ch + eps) / (sum + eps)
        o_ref[0, k] = ((ch_ref[k] + EPS) * inv).astype(o_ref.dtype)


def make_hist_params(scfac=0.2):
    """Deterministic parameter init replicating hist_layer_marco.__init__ ('ct')."""
    centers = np.array([-1000, -500, -100, -50, -25, 0, 25, 50, 100, 500, 1000],
                       dtype=np.float64)
    width = np.convolve(centers, [-1, 0, 1], mode='valid')
    width = np.abs(np.append(np.append([width[0]], width), [width[-1]])) * scfac
    bias = (-centers / width).astype(np.float32)     # conv bias
    weight = (1.0 / width).astype(np.float32)        # conv weight (flattened 1x1x1 kernel)
    return weight, bias                              # numpy, baked into the kernel


def _auto_tile_rows(out_bytes):
    """Generation-aware default tile: 2048 rows on 128-MiB-VMEM chips, 1024 on 64-MiB."""
    try:
        vmem = int(pltpu.get_tpu_info().vmem_capacity_bytes)
    except Exception:
        vmem = 64 << 20
    big = vmem >= (96 << 20)                       # v5e/v6e class vs v7x class
    budget = (24 << 20) if big else (12 << 20)     # double-buffered block budget
    per_row = 2 * LANES * (4 + K * out_bytes)      # in f32 + K out channels, x2 bufs
    tm = max(256, (budget // per_row) // 8 * 8)
    return int(min(tm, 2048 if big else 1024))


def hist_layer_forward(x, weight, bias, *, normalize=False, tm=None,
                       out_dtype=jnp.float32):
    """x: [N, 1, D, H, W] -> [N, K, D, H, W].

    `weight`/`bias` must be concrete (numpy / host) arrays of shape [K]; they are
    folded into the kernel as compile-time constants.
    """
    N, C, D, H, W = x.shape
    assert C == 1, "hist_layer_marco expects a single input channel"
    x = x.astype(jnp.float32)

    out_bytes = int(jnp.dtype(out_dtype).itemsize)
    align = max(8, 32 // max(out_bytes, 1))         # sublane multiple: f32->8, bf16->16

    weights = tuple(float(v) for v in np.asarray(weight, dtype=np.float32).reshape(-1))
    biases = tuple(float(v) for v in np.asarray(bias, dtype=np.float32).reshape(-1))
    assert len(weights) == K and len(biases) == K

    DHW = D * H * W
    if DHW % LANES == 0:
        rows_pn = DHW // LANES                      # pure reshape, no pad / no slice
        pad = 0
    else:
        rows_pn = _round_up(-(-DHW // LANES), align)
        pad = rows_pn * LANES - DHW                 # lane-constraint pad (< align*128)

    if tm is None:
        tm = _auto_tile_rows(out_bytes)
    tm_eff = min(int(tm), _round_up(rows_pn, align))
    tm_eff = max(align, (tm_eff // align) * align)
    # Guarantee >=2 grid steps when N==1 so both TensorCores get work (megacore).
    if N == 1 and rows_pn > align and -(-rows_pn // tm_eff) < 2:
        tm_eff = max(align, min(tm_eff, _round_up(-(-rows_pn // 2), align)))

    x2d = x.reshape(N, DHW)
    if pad:
        # Tail elements compute sech(bias[k]) garbage; they are sliced off below.
        x2d = jnp.pad(x2d, ((0, 0), (0, pad)))
    x3d = x2d.reshape(N, rows_pn, LANES)

    grid = (N, -(-rows_pn // tm_eff))               # ragged last block is masked

    scratch = []
    if normalize:
        scratch = [pltpu.VMEM((K, tm_eff, LANES), jnp.float32),
                   pltpu.VMEM((tm_eff, LANES), jnp.float32)]

    block_bytes = tm_eff * LANES * (4 + K * out_bytes)
    scratch_bytes = (K + 1) * tm_eff * LANES * 4 if normalize else 0
    vmem_limit = int(min(max(3 * block_bytes + scratch_bytes + (4 << 20), 16 << 20),
                         64 << 20))

    elems = N * rows_pn * LANES
    cost = pl.CostEstimate(
        flops=13 * K * elems,
        transcendentals=2 * K * elems,
        bytes_accessed=elems * 4 + K * elems * out_bytes,
    )

    refine = out_bytes >= 4                         # Newton step only for f32 output

    out = pl.pallas_call(
        functools.partial(_hist_kernel, weights=weights, biases=biases,
                          normalize=normalize, refine=refine),
        out_shape=jax.ShapeDtypeStruct((N, K, rows_pn, LANES), out_dtype),
        grid=grid,
        in_specs=[pl.BlockSpec((1, tm_eff, LANES), lambda n, i: (n, i, 0))],
        out_specs=pl.BlockSpec((1, K, tm_eff, LANES), lambda n, i: (n, 0, i, 0)),
        scratch_shapes=scratch,
        compiler_params=pltpu.CompilerParams(
            dimension_semantics=("parallel", "parallel"),
            vmem_limit_bytes=vmem_limit),
        cost_estimate=cost,
    )(x3d)

    # Output is produced directly in (N, K, ...) layout -> pure reshape.
    flat = out.reshape(N, K, rows_pn * LANES)
    if rows_pn * LANES != DHW:
        flat = flat[:, :, :DHW]
    return flat.reshape(N, K, D, H, W)

# TODO(synk): tensorboard() (host-side scalar logging) is not part of the forward pass
# and has no Pallas equivalent.


if __name__ == "__main__":
    key = jax.random.PRNGKey(0)
    # Small NCDHW input (dim=3 default of the module), CT-like value range.
    x = jax.random.normal(key, (2, 1, 8, 16, 16), dtype=jnp.float32) * 300.0

    weight, bias = make_hist_params(scfac=0.2)
    w_j = jnp.asarray(weight)[None, :, None, None, None]
    b_j = jnp.asarray(bias)[None, :, None, None, None]
    ref = 1.0 / jnp.cosh(x * w_j + b_j)

    # 1) default f32 path
    out = jax.block_until_ready(hist_layer_forward(x, weight, bias))
    assert out.shape == (2, K, 8, 16, 16)
    assert np.allclose(np.asarray(out), np.asarray(ref), rtol=1e-5, atol=1e-5), \
        "f32 mismatch vs reference"

    # 2) bf16 output path (halves the dominant HBM write traffic)
    out_bf16 = jax.block_until_ready(
        hist_layer_forward(x, weight, bias, out_dtype=jnp.bfloat16))
    assert np.allclose(np.asarray(out_bf16.astype(jnp.float32)), np.asarray(ref),
                       rtol=2e-2, atol=2e-2), "bf16 mismatch vs reference"

    # 3) normalize=True path (channels kept in f32 scratch until after normalization)
    out_n = jax.block_until_ready(hist_layer_forward(x, weight, bias, normalize=True))
    ref_n = (ref + EPS) / (ref.sum(axis=1, keepdims=True) + EPS)
    assert np.allclose(np.asarray(out_n), np.asarray(ref_n), rtol=1e-4, atol=1e-5), \
        "normalize mismatch vs reference"

    # 4) ragged spatial volume (DHW not a multiple of 128): lane pad + masked edge block
    x_odd = jax.random.normal(jax.random.PRNGKey(1), (1, 1, 5, 7, 9),
                              dtype=jnp.float32) * 300.0
    out_odd = jax.block_until_ready(hist_layer_forward(x_odd, weight, bias))
    ref_odd = 1.0 / jnp.cosh(x_odd * w_j + b_j)
    assert out_odd.shape == (1, K, 5, 7, 9)
    assert np.allclose(np.asarray(out_odd), np.asarray(ref_odd),
                       rtol=1e-5, atol=1e-5), "ragged-shape mismatch vs reference"

    print("KERNEL_OK")
</pallas_src>

<mosaic_0001>
module attributes {stable_mosaic.version = 11 : i64} {
  func.func @_hist_kernel(%arg0: i32, %arg1: i32, %arg2: memref<1x16x128xf32, #tpu.memory_space<vmem>>, %arg3: memref<1x11x16x128xf32, #tpu.memory_space<vmem>>) attributes {dimension_semantics = [#tpu.dimension_semantics<parallel>, #tpu.dimension_semantics<parallel>], iteration_bounds = array<i64: 2, 1>, scalar_prefetch = 0 : i64, scratch_operands = 0 : i64, tpu.core_type = #tpu.core_type<tc>, window_params = [{transform_indices = @transform_0, window_bounds = array<i64: 1, 16, 128>}, {transform_indices = @transform_1, window_bounds = array<i64: 1, 11, 16, 128>}]} {
    %c0 = arith.constant 0 : index
    %c0_0 = arith.constant 0 : index
    %c0_1 = arith.constant 0 : index
    %0 = vector.load %arg2[%c0, %c0_0, %c0_1] : memref<1x16x128xf32, #tpu.memory_space<vmem>>, vector<1x16x128xf32>
    %1 = vector.shape_cast %0 : vector<1x16x128xf32> to vector<16x128xf32>
    %cst = arith.constant 0.00555555569 : f32
    %2 = vector.broadcast %cst : f32 to vector<16x128xf32>
    %3 = arith.mulf %1, %2 : vector<16x128xf32>
    %cst_2 = arith.constant 5.55555534 : f32
    %4 = vector.broadcast %cst_2 : f32 to vector<16x128xf32>
    %5 = arith.addf %3, %4 : vector<16x128xf32>
    %6 = math.absf %5 : vector<16x128xf32>
    %cst_3 = arith.constant 0.000000e+00 : f32
    %7 = vector.broadcast %cst_3 : f32 to vector<16x128xf32>
    %8 = arith.subf %7, %6 : vector<16x128xf32>
    %9 = math.exp %8 : vector<16x128xf32>
    %10 = arith.mulf %9, %9 : vector<16x128xf32>
    %cst_4 = arith.constant 1.000000e+00 : f32
    %11 = vector.broadcast %cst_4 : f32 to vector<16x128xf32>
    %12 = arith.addf %11, %10 : vector<16x128xf32>
    %13 = tpu.reciprocal %12 {approx = true} : vector<16x128xf32> -> vector<16x128xf32>
    %14 = arith.mulf %12, %13 : vector<16x128xf32>
    %cst_5 = arith.constant 2.000000e+00 : f32
    %15 = vector.broadcast %cst_5 : f32 to vector<16x128xf32>
    %16 = arith.subf %15, %14 : vector<16x128xf32>
    %17 = arith.mulf %13, %16 : vector<16x128xf32>
    %cst_6 = arith.constant 2.000000e+00 : f32
    %18 = vector.broadcast %cst_6 : f32 to vector<16x128xf32>
    %19 = arith.mulf %18, %9 : vector<16x128xf32>
    %20 = arith.mulf %19, %17 : vector<16x128xf32>
    %c0_7 = arith.constant 0 : index
    %c0_8 = arith.constant 0 : index
    %c0_9 = arith.constant 0 : index
    %c0_10 = arith.constant 0 : index
    %21 = vector.load %arg3[%c0_7, %c0_8, %c0_9, %c0_10] : memref<1x11x16x128xf32, #tpu.memory_space<vmem>>, vector<1x1x16x128xf32>
    %22 = vector.shape_cast %21 : vector<1x1x16x128xf32> to vector<16x128xf32>
    %23 = vector.shape_cast %20 : vector<16x128xf32> to vector<1x1x16x128xf32>
    tpu.vector_store %arg3[%c0_7, %c0_8, %c0_9, %c0_10], %23 {strides = array<i32>} : memref<1x11x16x128xf32, #tpu.memory_space<vmem>>, vector<1x1x16x128xf32>,
    %cst_11 = arith.constant 0.00555555569 : f32
    %24 = vector.broadcast %cst_11 : f32 to vector<16x128xf32>
    %25 = arith.mulf %1, %24 : vector<16x128xf32>
    %cst_12 = arith.constant 2.77777767 : f32
    %26 = vector.broadcast %cst_12 : f32 to vector<16x128xf32>
    %27 = arith.addf %25, %26 : vector<16x128xf32>
    %28 = math.absf %27 : vector<16x128xf32>
    %cst_13 = arith.constant 0.000000e+00 : f32
    %29 = vector.broadcast %cst_13 : f32 to vector<16x128xf32>
    %30 = arith.subf %29, %28 : vector<16x128xf32>
    %31 = math.exp %30 : vector<16x128xf32>
    %32 = arith.mulf %31, %31 : vector<16x128xf32>
    %cst_14 = arith.constant 1.000000e+00 : f32
    %33 = vector.broadcast %cst_14 : f32 to vector<16x128xf32>
    %34 = arith.addf %33, %32 : vector<16x128xf32>
    %35 = tpu.reciprocal %34 {approx = true} : vector<16x128xf32> -> vector<16x128xf32>
    %36 = arith.mulf %34, %35 : vector<16x128xf32>
    %cst_15 = arith.constant 2.000000e+00 : f32
    %37 = vector.broadcast %cst_15 : f32 to vector<16x128xf32>
    %38 = arith.subf %37, %36 : vector<16x128xf32>
    %39 = arith.mulf %35, %38 : vector<16x128xf32>
    %cst_16 = arith.constant 2.000000e+00 : f32
    %40 = vector.broadcast %cst_16 : f32 to vector<16x128xf32>
    %41 = arith.mulf %40, %31 : vector<16x128xf32>
    %42 = arith.mulf %41, %39 : vector<16x128xf32>
    %c0_17 = arith.constant 0 : index
    %c1 = arith.constant 1 : index
    %c0_18 = arith.constant 0 : index
    %c0_19 = arith.constant 0 : index
    %43 = vector.load %arg3[%c0_17, %c1, %c0_18, %c0_19] : memref<1x11x16x128xf32, #tpu.memory_space<vmem>>, vector<1x1x16x128xf32>
    %44 = vector.shape_cast %43 : vector<1x1x16x128xf32> to vector<16x128xf32>
    %45 = vector.shape_cast %42 : vector<16x128xf32> to vector<1x1x16x128xf32>
    tpu.vector_store %arg3[%c0_17, %c1, %c0_18, %c0_19], %45 {strides = array<i32>} : memref<1x11x16x128xf32, #tpu.memory_space<vmem>>, vector<1x1x16x128xf32>,
    %cst_20 = arith.constant 0.0111111114 : f32
    %46 = vector.broadcast %cst_20 : f32 to vector<16x128xf32>
    %47 = arith.mulf %1, %46 : vector<16x128xf32>
    %cst_21 = arith.constant 1.11111116 : f32
    %48 = vector.broadcast %cst_21 : f32 to vector<16x128xf32>
    %49 = arith.addf %47, %48 : vector<16x128xf32>
    %50 = math.absf %49 : vector<16x128xf32>
    %cst_22 = arith.constant 0.000000e+00 : f32
    %51 = vector.broadcast %cst_22 : f32 to vector<16x128xf32>
    %52 = arith.subf %51, %50 : vector<16x128xf32>
    %53 = math.exp %52 : vector<16x128xf32>
    %54 = arith.mulf %53, %53 : vector<16x128xf32>
    %cst_23 = arith.constant 1.000000e+00 : f32
    %55 = vector.broadcast %cst_23 : f32 to vector<16x128xf32>
    %56 = arith.addf %55, %54 : vector<16x128xf32>
    %57 = tpu.reciprocal %56 {approx = true} : vector<16x128xf32> -> vector<16x128xf32>
    %58 = arith.mulf %56, %57 : vector<16x128xf32>
    %cst_24 = arith.constant 2.000000e+00 : f32
    %59 = vector.broadcast %cst_24 : f32 to vector<16x128xf32>
    %60 = arith.subf %59, %58 : vector<16x128xf32>
    %61 = arith.mulf %57, %60 : vector<16x128xf32>
    %cst_25 = arith.constant 2.000000e+00 : f32
    %62 = vector.broadcast %cst_25 : f32 to vector<16x128xf32>
    %63 = arith.mulf %62, %53 : vector<16x128xf32>
    %64 = arith.mulf %63, %61 : vector<16x128xf32>
    %c0_26 = arith.constant 0 : index
    %c2 = arith.constant 2 : index
    %c0_27 = arith.constant 0 : index
    %c0_28 = arith.constant 0 : index
    %65 = vector.load %arg3[%c0_26, %c2, %c0_27, %c0_28] : memref<1x11x16x128xf32, #tpu.memory_space<vmem>>, vector<1x1x16x128xf32>
    %66 = vector.shape_cast %65 : vector<1x1x16x128xf32> to vector<16x128xf32>
    %67 = vector.shape_cast %64 : vector<16x128xf32> to vector<1x1x16x128xf32>
    tpu.vector_store %arg3[%c0_26, %c2, %c0_27, %c0_28], %67 {strides = array<i32>} : memref<1x11x16x128xf32, #tpu.memory_space<vmem>>, vector<1x1x16x128xf32>,
    %cst_29 = arith.constant 0.0666666701 : f32
    %68 = vector.broadcast %cst_29 : f32 to vector<16x128xf32>
    %69 = arith.mulf %1, %68 : vector<16x128xf32>
    %cst_30 = arith.constant 3.33333325 : f32
    %70 = vector.broadcast %cst_30 : f32 to vector<16x128xf32>
    %71 = arith.addf %69, %70 : vector<16x128xf32>
    %72 = math.absf %71 : vector<16x128xf32>
    %cst_31 = arith.constant 0.000000e+00 : f32
    %73 = vector.broadcast %cst_31 : f32 to vector<16x128xf32>
    %74 = arith.subf %73, %72 : vector<16x128xf32>
    %75 = math.exp %74 : vector<16x128xf32>
    %76 = arith.mulf %75, %75 : vector<16x128xf32>
    %cst_32 = arith.constant 1.000000e+00 : f32
    %77 = vector.broadcast %cst_32 : f32 to vector<16x128xf32>
    %78 = arith.addf %77, %76 : vector<16x128xf32>
    %79 = tpu.reciprocal %78 {approx = true} : vector<16x128xf32> -> vector<16x128xf32>
    %80 = arith.mulf %78, %79 : vector<16x128xf32>
    %cst_33 = arith.constant 2.000000e+00 : f32
    %81 = vector.broadcast %cst_33 : f32 to vector<16x128xf32>
    %82 = arith.subf %81, %80 : vector<16x128xf32>
    %83 = arith.mulf %79, %82 : vector<16x128xf32>
    %cst_34 = arith.constant 2.000000e+00 : f32
    %84 = vector.broadcast %cst_34 : f32 to vector<16x128xf32>
    %85 = arith.mulf %84, %75 : vector<16x128xf32>
    %86 = arith.mulf %85, %83 : vector<16x128xf32>
    %c0_35 = arith.constant 0 : index
    %c3 = arith.constant 3 : index
    %c0_36 = arith.constant 0 : index
    %c0_37 = arith.constant 0 : index
    %87 = vector.load %arg3[%c0_35, %c3, %c0_36, %c0_37] : memref<1x11x16x128xf32, #tpu.memory_space<vmem>>, vector<1x1x16x128xf32>
    %88 = vector.shape_cast %87 : vector<1x1x16x128xf32> to vector<16x128xf32>
    %89 = vector.shape_cast %86 : vector<16x128xf32> to vector<1x1x16x128xf32>
    tpu.vector_store %arg3[%c0_35, %c3, %c0_36, %c0_37], %89 {strides = array<i32>} : memref<1x11x16x128xf32, #tpu.memory_space<vmem>>, vector<1x1x16x128xf32>,
    %cst_38 = arith.constant 1.000000e-01 : f32
    %90 = vector.broadcast %cst_38 : f32 to vector<16x128xf32>
    %91 = arith.mulf %1, %90 : vector<16x128xf32>
    %cst_39 = arith.constant 2.500000e+00 : f32
    %92 = vector.broadcast %cst_39 : f32 to vector<16x128xf32>
    %93 = arith.addf %91, %92 : vector<16x128xf32>
    %94 = math.absf %93 : vector<16x128xf32>
    %cst_40 = arith.constant 0.000000e+00 : f32
    %95 = vector.broadcast %cst_40 : f32 to vector<16x128xf32>
    %96 = arith.subf %95, %94 : vector<16x128xf32>
    %97 = math.exp %96 : vector<16x128xf32>
    %98 = arith.mulf %97, %97 : vector<16x128xf32>
    %cst_41 = arith.constant 1.000000e+00 : f32
    %99 = vector.broadcast %cst_41 : f32 to vector<16x128xf32>
    %100 = arith.addf %99, %98 : vector<16x128xf32>
    %101 = tpu.reciprocal %100 {approx = true} : vector<16x128xf32> -> vector<16x128xf32>
    %102 = arith.mulf %100, %101 : vector<16x128xf32>
    %cst_42 = arith.constant 2.000000e+00 : f32
    %103 = vector.broadcast %cst_42 : f32 to vector<16x128xf32>
    %104 = arith.subf %103, %102 : vector<16x128xf32>
    %105 = arith.mulf %101, %104 : vector<16x128xf32>
    %cst_43 = arith.constant 2.000000e+00 : f32
    %106 = vector.broadcast %cst_43 : f32 to vector<16x128xf32>
    %107 = arith.mulf %106, %97 : vector<16x128xf32>
    %108 = arith.mulf %107, %105 : vector<16x128xf32>
    %c0_44 = arith.constant 0 : index
    %c4 = arith.constant 4 : index
    %c0_45 = arith.constant 0 : index
    %c0_46 = arith.constant 0 : index
    %109 = vector.load %arg3[%c0_44, %c4, %c0_45, %c0_46] : memref<1x11x16x128xf32, #tpu.memory_space<vmem>>, vector<1x1x16x128xf32>
    %110 = vector.shape_cast %109 : vector<1x1x16x128xf32> to vector<16x128xf32>
    %111 = vector.shape_cast %108 : vector<16x128xf32> to vector<1x1x16x128xf32>
    tpu.vector_store %arg3[%c0_44, %c4, %c0_45, %c0_46], %111 {strides = array<i32>} : memref<1x11x16x128xf32, #tpu.memory_space<vmem>>, vector<1x1x16x128xf32>,
    %cst_47 = arith.constant 1.000000e-01 : f32
    %112 = vector.broadcast %cst_47 : f32 to vector<16x128xf32>
    %113 = arith.mulf %1, %112 : vector<16x128xf32>
    %cst_48 = arith.constant -0.000000e+00 : f32
    %114 = vector.broadcast %cst_48 : f32 to vector<16x128xf32>
    %115 = arith.addf %113, %114 : vector<16x128xf32>
    %116 = math.absf %115 : vector<16x128xf32>
    %cst_49 = arith.constant 0.000000e+00 : f32
    %117 = vector.broadcast %cst_49 : f32 to vector<16x128xf32>
    %118 = arith.subf %117, %116 : vector<16x128xf32>
    %119 = math.exp %118 : vector<16x128xf32>
    %120 = arith.mulf %119, %119 : vector<16x128xf32>
    %cst_50 = arith.constant 1.000000e+00 : f32
    %121 = vector.broadcast %cst_50 : f32 to vector<16x128xf32>
    %122 = arith.addf %121, %120 : vector<16x128xf32>
    %123 = tpu.reciprocal %122 {approx = true} : vector<16x128xf32> -> vector<16x128xf32>
    %124 = arith.mulf %122, %123 : vector<16x128xf32>
    %cst_51 = arith.constant 2.000000e+00 : f32
    %125 = vector.broadcast %cst_51 : f32 to vector<16x128xf32>
    %126 = arith.subf %125, %124 : vector<16x128xf32>
    %127 = arith.mulf %123, %126 : vector<16x128xf32>
    %cst_52 = arith.constant 2.000000e+00 : f32
    %128 = vector.broadcast %cst_52 : f32 to vector<16x128xf32>
    %129 = arith.mulf %128, %119 : vector<16x128xf32>
    %130 = arith.mulf %129, %127 : vector<16x128xf32>
    %c0_53 = arith.constant 0 : index
    %c5 = arith.constant 5 : index
    %c0_54 = arith.constant 0 : index
    %c0_55 = arith.constant 0 : index
    %131 = vector.load %arg3[%c0_53, %c5, %c0_54, %c0_55] : memref<1x11x16x128xf32, #tpu.memory_space<vmem>>, vector<1x1x16x128xf32>
    %132 = vector.shape_cast %131 : vector<1x1x16x128xf32> to vector<16x128xf32>
    %133 = vector.shape_cast %130 : vector<16x128xf32> to vector<1x1x16x128xf32>
    tpu.vector_store %arg3[%c0_53, %c5, %c0_54, %c0_55], %133 {strides = array<i32>} : memref<1x11x16x128xf32, #tpu.memory_space<vmem>>, vector<1x1x16x128xf32>,
    %cst_56 = arith.constant 1.000000e-01 : f32
    %134 = vector.broadcast %cst_56 : f32 to vector<16x128xf32>
    %135 = arith.mulf %1, %134 : vector<16x128xf32>
    %cst_57 = arith.constant -2.500000e+00 : f32
    %136 = vector.broadcast %cst_57 : f32 to vector<16x128xf32>
    %137 = arith.addf %135, %136 : vector<16x128xf32>
    %138 = math.absf %137 : vector<16x128xf32>
    %cst_58 = arith.constant 0.000000e+00 : f32
    %139 = vector.broadcast %cst_58 : f32 to vector<16x128xf32>
    %140 = arith.subf %139, %138 : vector<16x128xf32>
    %141 = math.exp %140 : vector<16x128xf32>
    %142 = arith.mulf %141, %141 : vector<16x128xf32>
    %cst_59 = arith.constant 1.000000e+00 : f32
    %143 = vector.broadcast %cst_59 : f32 to vector<16x128xf32>
    %144 = arith.addf %143, %142 : vector<16x128xf32>
    %145 = tpu.reciprocal %144 {approx = true} : vector<16x128xf32> -> vector<16x128xf32>
    %146 = arith.mulf %144, %145 : vector<16x128xf32>
    %cst_60 = arith.constant 2.000000e+00 : f32
    %147 = vector.broadcast %cst_60 : f32 to vector<16x128xf32>
    %148 = arith.subf %147, %146 : vector<16x128xf32>
    %149 = arith.mulf %145, %148 : vector<16x128xf32>
    %cst_61 = arith.constant 2.000000e+00 : f32
    %150 = vector.broadcast %cst_61 : f32 to vector<16x128xf32>
    %151 = arith.mulf %150, %141 : vector<16x128xf32>
    %152 = arith.mulf %151, %149 : vector<16x128xf32>
    %c0_62 = arith.constant 0 : index
    %c6 = arith.constant 6 : index
    %c0_63 = arith.constant 0 : index
    %c0_64 = arith.constant 0 : index
    %153 = vector.load %arg3[%c0_62, %c6, %c0_63, %c0_64] : memref<1x11x16x128xf32, #tpu.memory_space<vmem>>, vector<1x1x16x128xf32>
    %154 = vector.shape_cast %153 : vector<1x1x16x128xf32> to vector<16x128xf32>
    %155 = vector.shape_cast %152 : vector<16x128xf32> to vector<1x1x16x128xf32>
    tpu.vector_store %arg3[%c0_62, %c6, %c0_63, %c0_64], %155 {strides = array<i32>} : memref<1x11x16x128xf32, #tpu.memory_space<vmem>>, vector<1x1x16x128xf32>,
    %cst_65 = arith.constant 0.0666666701 : f32
    %156 = vector.broadcast %cst_65 : f32 to vector<16x128xf32>
    %157 = arith.mulf %1, %156 : vector<16x128xf32>
    %cst_66 = arith.constant -3.33333325 : f32
    %158 = vector.broadcast %cst_66 : f32 to vector<16x128xf32>
    %159 = arith.addf %157, %158 : vector<16x128xf32>
    %160 = math.absf %159 : vector<16x128xf32>
    %cst_67 = arith.constant 0.000000e+00 : f32
    %161 = vector.broadcast %cst_67 : f32 to vector<16x128xf32>
    %162 = arith.subf %161, %160 : vector<16x128xf32>
    %163 = math.exp %162 : vector<16x128xf32>
    %164 = arith.mulf %163, %163 : vector<16x128xf32>
    %cst_68 = arith.constant 1.000000e+00 : f32
    %165 = vector.broadcast %cst_68 : f32 to vector<16x128xf32>
    %166 = arith.addf %165, %164 : vector<16x128xf32>
    %167 = tpu.reciprocal %166 {approx = true} : vector<16x128xf32> -> vector<16x128xf32>
    %168 = arith.mulf %166, %167 : vector<16x128xf32>
    %cst_69 = arith.constant 2.000000e+00 : f32
    %169 = vector.broadcast %cst_69 : f32 to vector<16x128xf32>
    %170 = arith.subf %169, %168 : vector<16x128xf32>
    %171 = arith.mulf %167, %170 : vector<16x128xf32>
    %cst_70 = arith.constant 2.000000e+00 : f32
    %172 = vector.broadcast %cst_70 : f32 to vector<16x128xf32>
    %173 = arith.mulf %172, %163 : vector<16x128xf32>
    %174 = arith.mulf %173, %171 : vector<16x128xf32>
    %c0_71 = arith.constant 0 : index
    %c7 = arith.constant 7 : index
    %c0_72 = arith.constant 0 : index
    %c0_73 = arith.constant 0 : index
    %175 = vector.load %arg3[%c0_71, %c7, %c0_72, %c0_73] : memref<1x11x16x128xf32, #tpu.memory_space<vmem>>, vector<1x1x16x128xf32>
    %176 = vector.shape_cast %175 : vector<1x1x16x128xf32> to vector<16x128xf32>
    %177 = vector.shape_cast %174 : vector<16x128xf32> to vector<1x1x16x128xf32>
    tpu.vector_store %arg3[%c0_71, %c7, %c0_72, %c0_73], %177 {strides = array<i32>} : memref<1x11x16x128xf32, #tpu.memory_space<vmem>>, vector<1x1x16x128xf32>,
    %cst_74 = arith.constant 0.0111111114 : f32
    %178 = vector.broadcast %cst_74 : f32 to vector<16x128xf32>
    %179 = arith.mulf %1, %178 : vector<16x128xf32>
    %cst_75 = arith.constant -1.11111116 : f32
    %180 = vector.broadcast %cst_75 : f32 to vector<16x128xf32>
    %181 = arith.addf %179, %180 : vector<16x128xf32>
    %182 = math.absf %181 : vector<16x128xf32>
    %cst_76 = arith.constant 0.000000e+00 : f32
    %183 = vector.broadcast %cst_76 : f32 to vector<16x128xf32>
    %184 = arith.subf %183, %182 : vector<16x128xf32>
    %185 = math.exp %184 : vector<16x128xf32>
    %186 = arith.mulf %185, %185 : vector<16x128xf32>
    %cst_77 = arith.constant 1.000000e+00 : f32
    %187 = vector.broadcast %cst_77 : f32 to vector<16x128xf32>
    %188 = arith.addf %187, %186 : vector<16x128xf32>
    %189 = tpu.reciprocal %188 {approx = true} : vector<16x128xf32> -> vector<16x128xf32>
    %190 = arith.mulf %188, %189 : vector<16x128xf32>
    %cst_78 = arith.constant 2.000000e+00 : f32
    %191 = vector.broadcast %cst_78 : f32 to vector<16x128xf32>
    %192 = arith.subf %191, %190 : vector<16x128xf32>
    %193 = arith.mulf %189, %192 : vector<16x128xf32>
    %cst_79 = arith.constant 2.000000e+00 : f32
    %194 = vector.broadcast %cst_79 : f32 to vector<16x128xf32>
    %195 = arith.mulf %194, %185 : vector<16x128xf32>
    %196 = arith.mulf %195, %193 : vector<16x128xf32>
    %c0_80 = arith.constant 0 : index
    %c8 = arith.constant 8 : index
    %c0_81 = arith.constant 0 : index
    %c0_82 = arith.constant 0 : index
    %197 = vector.load %arg3[%c0_80, %c8, %c0_81, %c0_82] : memref<1x11x16x128xf32, #tpu.memory_space<vmem>>, vector<1x1x16x128xf32>
    %198 = vector.shape_cast %197 : vector<1x1x16x128xf32> to vector<16x128xf32>
    %199 = vector.shape_cast %196 : vector<16x128xf32> to vector<1x1x16x128xf32>
    tpu.vector_store %arg3[%c0_80, %c8, %c0_81, %c0_82], %199 {strides = array<i32>} : memref<1x11x16x128xf32, #tpu.memory_space<vmem>>, vector<1x1x16x128xf32>,
    %cst_83 = arith.constant 0.00555555569 : f32
    %200 = vector.broadcast %cst_83 : f32 to vector<16x128xf32>
    %201 = arith.mulf %1, %200 : vector<16x128xf32>
    %cst_84 = arith.constant -2.77777767 : f32
    %202 = vector.broadcast %cst_84 : f32 to vector<16x128xf32>
    %203 = arith.addf %201, %202 : vector<16x128xf32>
    %204 = math.absf %203 : vector<16x128xf32>
    %cst_85 = arith.constant 0.000000e+00 : f32
    %205 = vector.broadcast %cst_85 : f32 to vector<16x128xf32>
    %206 = arith.subf %205, %204 : vector<16x128xf32>
    %207 = math.exp %206 : vector<16x128xf32>
    %208 = arith.mulf %207, %207 : vector<16x128xf32>
    %cst_86 = arith.constant 1.000000e+00 : f32
    %209 = vector.broadcast %cst_86 : f32 to vector<16x128xf32>
    %210 = arith.addf %209, %208 : vector<16x128xf32>
    %211 = tpu.reciprocal %210 {approx = true} : vector<16x128xf32> -> vector<16x128xf32>
    %212 = arith.mulf %210, %211 : vector<16x128xf32>
    %cst_87 = arith.constant 2.000000e+00 : f32
    %213 = vector.broadcast %cst_87 : f32 to vector<16x128xf32>
    %214 = arith.subf %213, %212 : vector<16x128xf32>
    %215 = arith.mulf %211, %214 : vector<16x128xf32>
    %cst_88 = arith.constant 2.000000e+00 : f32
    %216 = vector.broadcast %cst_88 : f32 to vector<16x128xf32>
    %217 = arith.mulf %216, %207 : vector<16x128xf32>
    %218 = arith.mulf %217, %215 : vector<16x128xf32>
    %c0_89 = arith.constant 0 : index
    %c9 = arith.constant 9 : index
    %c0_90 = arith.constant 0 : index
    %c0_91 = arith.constant 0 : index
    %219 = vector.load %arg3[%c0_89, %c9, %c0_90, %c0_91] : memref<1x11x16x128xf32, #tpu.memory_space<vmem>>, vector<1x1x16x128xf32>
    %220 = vector.shape_cast %219 : vector<1x1x16x128xf32> to vector<16x128xf32>
    %221 = vector.shape_cast %218 : vector<16x128xf32> to vector<1x1x16x128xf32>
    tpu.vector_store %arg3[%c0_89, %c9, %c0_90, %c0_91], %221 {strides = array<i32>} : memref<1x11x16x128xf32, #tpu.memory_space<vmem>>, vector<1x1x16x128xf32>,
    %cst_92 = arith.constant 0.00555555569 : f32
    %222 = vector.broadcast %cst_92 : f32 to vector<16x128xf32>
    %223 = arith.mulf %1, %222 : vector<16x128xf32>
    %cst_93 = arith.constant -5.55555534 : f32
    %224 = vector.broadcast %cst_93 : f32 to vector<16x128xf32>
    %225 = arith.addf %223, %224 : vector<16x128xf32>
    %226 = math.absf %225 : vector<16x128xf32>
    %cst_94 = arith.constant 0.000000e+00 : f32
    %227 = vector.broadcast %cst_94 : f32 to vector<16x128xf32>
    %228 = arith.subf %227, %226 : vector<16x128xf32>
    %229 = math.exp %228 : vector<16x128xf32>
    %230 = arith.mulf %229, %229 : vector<16x128xf32>
    %cst_95 = arith.constant 1.000000e+00 : f32
    %231 = vector.broadcast %cst_95 : f32 to vector<16x128xf32>
    %232 = arith.addf %231, %230 : vector<16x128xf32>
    %233 = tpu.reciprocal %232 {approx = true} : vector<16x128xf32> -> vector<16x128xf32>
    %234 = arith.mulf %232, %233 : vector<16x128xf32>
    %cst_96 = arith.constant 2.000000e+00 : f32
    %235 = vector.broadcast %cst_96 : f32 to vector<16x128xf32>
    %236 = arith.subf %235, %234 : vector<16x128xf32>
    %237 = arith.mulf %233, %236 : vector<16x128xf32>
    %cst_97 = arith.constant 2.000000e+00 : f32
    %238 = vector.broadcast %cst_97 : f32 to vector<16x128xf32>
    %239 = arith.mulf %238, %229 : vector<16x128xf32>
    %240 = arith.mulf %239, %237 : vector<16x128xf32>
    %c0_98 = arith.constant 0 : index
    %c10 = arith.constant 10 : index
    %c0_99 = arith.constant 0 : index
    %c0_100 = arith.constant 0 : index
    %241 = vector.load %arg3[%c0_98, %c10, %c0_99, %c0_100] : memref<1x11x16x128xf32, #tpu.memory_space<vmem>>, vector<1x1x16x128xf32>
    %242 = vector.shape_cast %241 : vector<1x1x16x128xf32> to vector<16x128xf32>
    %243 = vector.shape_cast %240 : vector<16x128xf32> to vector<1x1x16x128xf32>
    tpu.vector_store %arg3[%c0_98, %c10, %c0_99, %c0_100], %243 {strides = array<i32>} : memref<1x11x16x128xf32, #tpu.memory_space<vmem>>, vector<1x1x16x128xf32>,
    return
  }
  func.func @transform_0(%arg0: i32, %arg1: i32) -> (i32, i32, i32) {
    %c0_i32 = arith.constant 0 : i32
    %c0_i32_0 = arith.constant 0 : i32
    return %arg0, %arg1, %c0_i32 : i32, i32, i32
  }
  func.func @transform_1(%arg0: i32, %arg1: i32) -> (i32, i32, i32, i32) {
    %c0_i32 = arith.constant 0 : i32
    %c0_i32_0 = arith.constant 0 : i32
    %c0_i32_1 = arith.constant 0 : i32
    return %arg0, %c0_i32, %arg1, %c0_i32_0 : i32, i32, i32, i32
  }
}

</mosaic_0001>

<llo_original>
// kernel: tpu_custom_call.1
$region0: #{tpu_custom_call.1}
  #allocation0 [shape = 'u32[]', space=smem, size = 0x4, offset = 0x4, fixed_abs, tag = 'smem constant byte address 0x4 - core index']
  #allocation1 [shape = 'u32[72,128]{1,0:T(1,128)}', space=vmem, size = 0x9000, scoped, tag = 'internal scratch']
  %s0 = inlined_call_operand.hbm [shape: f32[2,16,128], index: 0, kind: input, shape index: {}]
  %s1 = inlined_call_operand.hbm [shape: f32[2,11,16,128], index: 1, kind: output, shape index: {}]
  %s2 = sld [smem:[#allocation0]]
  $region41: #{tpu_custom_call.1} parent=0
    _
  %s4 = ssub.s32 1, %s2
  %s5 = scalar_select 0, %s4, %s2
  $region1: #{tpu_custom_call.1} parent=0
    #allocation2 [shape = 'u8[16384]{0}', space=vmem, size = 0x4000, scoped, tag = 'input window, operand 0']
    #allocation3 [shape = 's32[2]{0}', space=sflag, size = 0x8, scoped, tag = 'scoped memory for tpu_custom_call.1']
    #allocation4 [shape = 's32[2]{0}', space=sflag, size = 0x8, scoped, tag = 'scoped memory for tpu_custom_call.1']
    #allocation5 [shape = 'u8[180224]{0}', space=vmem, size = 0x2c000, scoped, tag = 'output window, operand 0']
    %6 = vsyncpa [#allocation3], 0
    %s7 = scalar_lea.sflag [#allocation3], 1
    %8 = vsyncpa %s7, 0
    %9 = vsyncpa [#allocation4], 0
    %s10 = scalar_lea.sflag [#allocation4], 1
    %11 = vsyncpa %s10, 0
    loop: start=0, step=1, limit=4
    $region2: #{tpu_custom_call.1} parent=1 // loop_pre_header
      _
    $region3: #{tpu_custom_call.1} parent=1 // loop_header
      %s13 = sphi 0, %s17
      %p14 = scmp.ge.s32.totalorder %s13, 4
      %s20 = sphi 0, %s32
      %s21 = sphi 0, %s28
      %s22 = sphi 0, %s20
      %s23 = sphi 0, %s21
      %s24 = sphi 0, %s22
      %s25 = sphi 0, %s23
      %s37 = sphi 0, %s39
      %s40 = sphi 0, %s37
      %s41 = sphi 0, %s40
      %s57 = sphi 0, %s41
      %s65 = sphi 0, %s67
      %s68 = sphi 0, %s65
      %s69 = sphi 0, %s68
      %s85 = sphi 0, %s69
    $region4: #{tpu_custom_call.1} parent=1 // loop_header_branch
      %16 = sbr.rel (%p14) target = $region8
    $region5: #{tpu_custom_call.1} parent=1 // loop_body
      %s18 = ssub.s32 %s13, 1
      %s19 = ssub.s32 %s13, 2
      %s26 = sadd.s32 1, %s21
      %p27 = scmp.ge.s32.totalorder %s26, 1
      %s28 = scalar_select %p27, 0, %s26
      %s29 = sadd.s32 1, %s20
      %s30 = scalar_select %p27, %s29, %s20
      %p31 = scmp.ge.s32.totalorder %s30, 2
      %s32 = scalar_select %p31, 0, %s30
      %s33 = ssub.s32 %s20, %s32
      %s34 = ssub.s32 %s21, %s28
      %s35 = sor.u32 %s33, %s34
      %p36 = scmp.eq.s32.totalorder %s35, 0
      %s38 = sadd.s32 %s37, 1
      %s39 = scalar_select %p36, %s37, %s38
      %p42 = pneg %p36
      %p43 = scmp.eq.s32.totalorder %s13, 1
      %p44 = por %p42, %p43
      %p45 = scmp.ne.s32.totalorder %s37, %s40
      %p46 = scmp.eq.s32.totalorder %s13, 0
      %p47 = por %p45, %p46
      %p48 = scmp.ne.s32.totalorder %s37, %s40
      %p49 = scmp.eq.s32.totalorder %s18, 1
      %p50 = por %p48, %p49
      %p51 = scmp.ne.s32.totalorder %s40, %s41
      %p52 = scmp.eq.s32.totalorder %s18, 0
      %p53 = por %p51, %p52
      %p54 = scmp.ne.s32.totalorder %s40, %s41
      %p55 = scmp.eq.s32.totalorder %s19, 1
      %p56 = por %p54, %p55
      %p58 = scmp.ne.s32.totalorder %s41, %s57
      %p59 = scmp.eq.s32.totalorder %s19, 0
      %p60 = por %p58, %p59
      %s61 = ssub.s32 %s20, %s32
      %s62 = ssub.s32 %s21, %s28
      %s63 = sor.u32 %s61, %s62
      %p64 = scmp.eq.s32.totalorder %s63, 0
      %s66 = sadd.s32 %s65, 1
      %s67 = scalar_select %p64, %s65, %s66
      %p70 = pneg %p64
      %p71 = scmp.eq.s32.totalorder %s13, 1
      %p72 = por %p70, %p71
      %p73 = scmp.ne.s32.totalorder %s65, %s68
      %p74 = scmp.eq.s32.totalorder %s13, 0
      %p75 = por %p73, %p74
      %p76 = scmp.ne.s32.totalorder %s65, %s68
      %p77 = scmp.eq.s32.totalorder %s18, 1
      %p78 = por %p76, %p77
      %p79 = scmp.ne.s32.totalorder %s68, %s69
      %p80 = scmp.eq.s32.totalorder %s18, 0
      %p81 = por %p79, %p80
      %p82 = scmp.ne.s32.totalorder %s68, %s69
      %p83 = scmp.eq.s32.totalorder %s19, 1
      %p84 = por %p82, %p83
      %p86 = scmp.ne.s32.totalorder %s69, %s85
      %p87 = scmp.eq.s32.totalorder %s19, 0
      %p88 = por %p86, %p87
      %p89 = scmp.le.s32.totalorder 1, %s13
      %p90 = scmp.lt.s32.totalorder %s13, 3
      %p91 = pnand %p89, %p90
      %p92 = pneg %p91
      // Predicated region
      $region9: #{tpu_custom_call.1} parent=5 // pred_check
        _
      $region10: #{tpu_custom_call.1} parent=5 // pred_check_branch
        %94 = sbr.rel (%p91) target = $region12
      $region11: #{tpu_custom_call.1} parent=5 // pred_region
        %s95 = ssub.s32 %s13, 1
      $region12: #{tpu_custom_call.1} parent=5 // pred_fallthru
        _
      %p96 = scmp.lt.s32.totalorder %s13, 2
      // Predicated region
      $region13: #{tpu_custom_call.1} parent=5 // pred_check
        %p97 = pneg %p96
      $region14: #{tpu_custom_call.1} parent=5 // pred_check_branch
        %99 = sbr.rel (%p97) target = $region16
      $region15: #{tpu_custom_call.1} parent=5 // pred_region
        // Predicated region
        $region17: #{tpu_custom_call.1} parent=15 // pred_check
          %p100 = pneg %p47
        $region18: #{tpu_custom_call.1} parent=15 // pred_check_branch
          %102 = sbr.rel (%p100) target = $region20
        $region19: #{tpu_custom_call.1} parent=15 // pred_region
          %s103 = sand.u32 %s37, 1
          %s104 = scalar_lea.sflag [#allocation3], %s103
          %s105 = sand.u32 %s37, 1
          %s106 = smul.addr %s105, 16
          %s107 = scalar_lea.vmem [#allocation2], %s106
          %s108 = smul.u32 2, %s21
          %110 = vsyncadd %s104, 0
          %s111 = smul.addr %s20, 2
          %s112 = sadd.s32 %s108, %s111
          %s113 = smul.addr %s112, 8
          %s114 = scalar_lea.hbm %s0, %s113
          %s115 = sshll.u32 %s114, 4
          %s116 = int_to_ptr.hbm [resolvable:$true] %s115
          %s117 = sshll.u32 %s107, 4
          %s118 = int_to_ptr.vmem [resolvable:$true] %s117
          %123 = dma.hbm_to_vmem [thread:$0]  %s116, 256, %s118, %s104, 128, 128, 8
        $region20: #{tpu_custom_call.1} parent=15 // pred_fallthru
          _
      $region16: #{tpu_custom_call.1} parent=5 // pred_fallthru
        _
      %p124 = scmp.le.s32.totalorder 1, %s13
      %p125 = scmp.lt.s32.totalorder %s13, 3
      %p126 = pnand %p124, %p125
      %p127 = pneg %p126
      // Predicated region
      $region21: #{tpu_custom_call.1} parent=5 // pred_check
        _
      $region22: #{tpu_custom_call.1} parent=5 // pred_check_branch
        %129 = sbr.rel (%p126) target = $region24
      $region23: #{tpu_custom_call.1} parent=5 // pred_region
        %s130 = ssub.s32 %s13, 1
        %s131 = sand.u32 %s40, 1
        %s132 = scalar_lea.sflag [#allocation3], %s131
        %s133 = sand.u32 %s40, 1
        %s134 = smul.addr %s133, 16
        %s135 = scalar_lea.vmem [#allocation2], %s134
        // Predicated region
        $region25: #{tpu_custom_call.1} parent=23 // pred_check
          %p136 = pneg %p53
        $region26: #{tpu_custom_call.1} parent=23 // pred_check_branch
          %138 = sbr.rel (%p136) target = $region28
        $region27: #{tpu_custom_call.1} parent=23 // pred_region
          %140 = dma.done %s132, 256
        $region28: #{tpu_custom_call.1} parent=23 // pred_fallthru
          _
        %s141 = sand.u32 %s40, 1
        %s142 = scalar_lea.sflag [#allocation3], %s141
        %s143 = sand.u32 %s40, 1
        %s144 = smul.addr %s143, 16
        %s145 = scalar_lea.vmem [#allocation2], %s144
        %p146 = pneg %p53
        %p147 = pneg %p50
        %p148 = pneg %p81
        %p149 = pneg %p78
        %s150 = sand.u32 %s68, 1
        %s151 = scalar_lea.sflag [#allocation4], %s150
        %s152 = sand.u32 %s68, 1
        %s153 = smul.addr %s152, 176
        %s154 = scalar_lea.vmem [#allocation5], %s153
        %s155 = smul.u32 2, %s23
        %s156 = smul.u32 2, %s23
        %v157 = vld [vmem:[%s135] sm:$0xff]
        %v158 = vld [vmem:[%s135 + $0x8] sm:$0xff]
        %v159 = vmul.f32 %v157, 0.0055555557
        %v160 = vmul.f32 %v158, 0.0055555557
        %v161 = vadd.f32 %v159, 5.5555553
        %v162 = vadd.f32 %v160, 5.5555553
        %v163 = vand.u32 2147483647, %v161
        %v164 = vand.u32 2147483647, %v162
        %v165 = vsub.f32 0.0, %v163
        %v166 = vsub.f32 0.0, %v164
        %v167 = vmul.f32 %v165, 1.442695
        %v168 = vpow.pop %v167
        %v169 = vmul.f32 %v166, 1.442695
        %v170 = vpow.pop %v169
        %v171 = vmul.f32 %v168, %v168
        %v172 = vmul.f32 %v170, %v170
        %v173 = vadd.f32 %v171, 1.0
        %v174 = vadd.f32 %v172, 1.0
        %v175 = vrcp.pop %v173
        %v176 = vrcp.pop %v174
        %v177 = vmul.f32 %v173, %v175
        %v178 = vmul.f32 %v174, %v176
        %v179 = vsub.f32 2.0, %v177
        %v180 = vsub.f32 2.0, %v178
        %v181 = vmul.f32 %v175, %v179
        %v182 = vmul.f32 %v176, %v180
        %v183 = vmul.f32 %v168, 2.0
        %v184 = vmul.f32 %v170, 2.0
        %v185 = vmul.f32 %v183, %v181
        %v186 = vmul.f32 %v184, %v182
        %187 = vst [vmem:[%s154] sm:$0xff] %v185
        %188 = vst [vmem:[%s154 + $0x8] sm:$0xff] %v186
        %v189 = vadd.f32 %v159, 2.7777777
        %v190 = vadd.f32 %v160, 2.7777777
        %v191 = vand.u32 2147483647, %v189
        %v192 = vand.u32 2147483647, %v190
        %v193 = vsub.f32 0.0, %v191
        %v194 = vsub.f32 0.0, %v192
        %v195 = vmul.f32 %v193, 1.442695
        %v196 = vpow.pop %v195
        %v197 = vmul.f32 %v194, 1.442695
        %v198 = vpow.pop %v197
        %v199 = vmul.f32 %v196, %v196
        %v200 = vmul.f32 %v198, %v198
        %v201 = vadd.f32 %v199, 1.0
        %v202 = vadd.f32 %v200, 1.0
        %v203 = vrcp.pop %v201
        %v204 = vrcp.pop %v202
        %v205 = vmul.f32 %v201, %v203
        %v206 = vmul.f32 %v202, %v204
        %v207 = vsub.f32 2.0, %v205
        %v208 = vsub.f32 2.0, %v206
        %v209 = vmul.f32 %v203, %v207
        %v210 = vmul.f32 %v204, %v208
        %v211 = vmul.f32 %v196, 2.0
        %v212 = vmul.f32 %v198, 2.0
        %v213 = vmul.f32 %v211, %v209
        %v214 = vmul.f32 %v212, %v210
        %s215 = scalar_lea.vmem %s154, 16 [#allocation5]
        %216 = vst [vmem:[%s215] sm:$0xff] %v213
        %217 = vst [vmem:[%s215 + $0x8] sm:$0xff] %v214
        %v218 = vmul.f32 %v157, 0.011111111
        %v219 = vmul.f32 %v158, 0.011111111
        %v220 = vadd.f32 %v218, 1.1111112
        %v221 = vadd.f32 %v219, 1.1111112
        %v222 = vand.u32 2147483647, %v220
        %v223 = vand.u32 2147483647, %v221
        %v224 = vsub.f32 0.0, %v222
        %v225 = vsub.f32 0.0, %v223
        %v226 = vmul.f32 %v224, 1.442695
        %v227 = vpow.pop %v226
        %v228 = vmul.f32 %v225, 1.442695
        %v229 = vpow.pop %v228
        %v230 = vmul.f32 %v227, %v227
        %v231 = vmul.f32 %v229, %v229
        %v232 = vadd.f32 %v230, 1.0
        %v233 = vadd.f32 %v231, 1.0
        %v234 = vrcp.pop %v232
        %v235 = vrcp.pop %v233
        %v236 = vmul.f32 %v232, %v234
        %v237 = vmul.f32 %v233, %v235
        %v238 = vsub.f32 2.0, %v236
        %v239 = vsub.f32 2.0, %v237
        %v240 = vmul.f32 %v234, %v238
        %v241 = vmul.f32 %v235, %v239
        %v242 = vmul.f32 %v227, 2.0
        %v243 = vmul.f32 %v229, 2.0
        %v244 = vmul.f32 %v242, %v240
        %v245 = vmul.f32 %v243, %v241
        %s246 = scalar_lea.vmem %s154, 32 [#allocation5]
        %247 = vst [vmem:[%s246] sm:$0xff] %v244
        %248 = vst [vmem:[%s246 + $0x8] sm:$0xff] %v245
        %v249 = vmul.f32 %v157, 0.06666667
        %v250 = vmul.f32 %v158, 0.06666667
        %v251 = vadd.f32 %v249, 3.3333333
        %v252 = vadd.f32 %v250, 3.3333333
        %v253 = vand.u32 2147483647, %v251
        %v254 = vand.u32 2147483647, %v252
        %v255 = vsub.f32 0.0, %v253
        %v256 = vsub.f32 0.0, %v254
        %v257 = vmul.f32 %v255, 1.442695
        %v258 = vpow.pop %v257
        %v259 = vmul.f32 %v256, 1.442695
        %v260 = vpow.pop %v259
        %v261 = vmul.f32 %v258, %v258
        %v262 = vmul.f32 %v260, %v260
        %v263 = vadd.f32 %v261, 1.0
        %v264 = vadd.f32 %v262, 1.0
        %v265 = vrcp.pop %v263
        %v266 = vrcp.pop %v264
        %v267 = vmul.f32 %v263, %v265
        %v268 = vmul.f32 %v264, %v266
        %v269 = vsub.f32 2.0, %v267
        %v270 = vsub.f32 2.0, %v268
        %v271 = vmul.f32 %v265, %v269
        %v272 = vmul.f32 %v266, %v270
        %v273 = vmul.f32 %v258, 2.0
        %v274 = vmul.f32 %v260, 2.0
        %v275 = vmul.f32 %v273, %v271
        %v276 = vmul.f32 %v274, %v272
        %s277 = scalar_lea.vmem %s154, 48 [#allocation5]
        %278 = vst [vmem:[%s277] sm:$0xff] %v275
        %279 = vst [vmem:[%s277 + $0x8] sm:$0xff] %v276
        %v280 = vmul.f32 %v157, 0.1
        %v281 = vmul.f32 %v158, 0.1
        %v282 = vadd.f32 %v280, 2.5
        %v283 = vadd.f32 %v281, 2.5
        %v284 = vand.u32 2147483647, %v282
        %v285 = vand.u32 2147483647, %v283
        %v286 = vsub.f32 0.0, %v284
        %v287 = vsub.f32 0.0, %v285
        %v288 = vmul.f32 %v286, 1.442695
        %v289 = vpow.pop %v288
        %v290 = vmul.f32 %v287, 1.442695
        %v291 = vpow.pop %v290
        %v292 = vmul.f32 %v289, %v289
        %v293 = vmul.f32 %v291, %v291
        %v294 = vadd.f32 %v292, 1.0
        %v295 = vadd.f32 %v293, 1.0
        %v296 = vrcp.pop %v294
        %v297 = vrcp.pop %v295
        %v298 = vmul.f32 %v294, %v296
        %v299 = vmul.f32 %v295, %v297
        %v300 = vsub.f32 2.0, %v298
        %v301 = vsub.f32 2.0, %v299
        %v302 = vmul.f32 %v296, %v300
        %v303 = vmul.f32 %v297, %v301
        %v304 = vmul.f32 %v289, 2.0
        %v305 = vmul.f32 %v291, 2.0
        %v306 = vmul.f32 %v304, %v302
        %v307 = vmul.f32 %v305, %v303
        %s308 = scalar_lea.vmem %s154, 64 [#allocation5]
        %309 = vst [vmem:[%s308] sm:$0xff] %v306
        %310 = vst [vmem:[%s308 + $0x8] sm:$0xff] %v307
        %v311 = vand.u32 2147483647, %v280
        %v312 = vand.u32 2147483647, %v281
        %v313 = vsub.f32 0.0, %v311
        %v314 = vsub.f32 0.0, %v312
        %v315 = vmul.f32 %v313, 1.442695
        %v316 = vpow.pop %v315
        %v317 = vmul.f32 %v314, 1.442695
        %v318 = vpow.pop %v317
        %v319 = vmul.f32 %v316, %v316
        %v320 = vmul.f32 %v318, %v318
        %v321 = vadd.f32 %v319, 1.0
        %v322 = vadd.f32 %v320, 1.0
        %v323 = vrcp.pop %v321
        %v324 = vrcp.pop %v322
        %v325 = vmul.f32 %v321, %v323
        %v326 = vmul.f32 %v322, %v324
        %v327 = vsub.f32 2.0, %v325
        %v328 = vsub.f32 2.0, %v326
        %v329 = vmul.f32 %v323, %v327
        %v330 = vmul.f32 %v324, %v328
        %v331 = vmul.f32 %v316, 2.0
        %v332 = vmul.f32 %v318, 2.0
        %v333 = vmul.f32 %v331, %v329
        %v334 = vmul.f32 %v332, %v330
        %s335 = scalar_lea.vmem %s154, 80 [#allocation5]
        %336 = vst [vmem:[%s335] sm:$0xff] %v333
        %337 = vst [vmem:[%s335 + $0x8] sm:$0xff] %v334
        %v338 = vadd.f32 %v280, -2.5
        %v339 = vadd.f32 %v281, -2.5
        %v340 = vand.u32 2147483647, %v338
        %v341 = vand.u32 2147483647, %v339
        %v342 = vsub.f32 0.0, %v340
        %v343 = vsub.f32 0.0, %v341
        %v344 = vmul.f32 %v342, 1.442695
        %v345 = vpow.pop %v344
        %v346 = vmul.f32 %v343, 1.442695
        %v347 = vpow.pop %v346
        %v348 = vmul.f32 %v345, %v345
        %v349 = vmul.f32 %v347, %v347
        %v350 = vadd.f32 %v348, 1.0
        %v351 = vadd.f32 %v349, 1.0
        %v352 = vrcp.pop %v350
        %v353 = vrcp.pop %v351
        %v354 = vmul.f32 %v350, %v352
        %v355 = vmul.f32 %v351, %v353
        %v356 = vsub.f32 2.0, %v354
        %v357 = vsub.f32 2.0, %v355
        %v358 = vmul.f32 %v352, %v356
        %v359 = vmul.f32 %v353, %v357
        %v360 = vmul.f32 %v345, 2.0
        %v361 = vmul.f32 %v347, 2.0
        %v362 = vmul.f32 %v360, %v358
        %v363 = vmul.f32 %v361, %v359
        %s364 = scalar_lea.vmem %s154, 96 [#allocation5]
        %365 = vst [vmem:[%s364] sm:$0xff] %v362
        %366 = vst [vmem:[%s364 + $0x8] sm:$0xff] %v363
        %v367 = vadd.f32 %v249, -3.3333333
        %v368 = vadd.f32 %v250, -3.3333333
        %v369 = vand.u32 2147483647, %v367
        %v370 = vand.u32 2147483647, %v368
        %v371 = vsub.f32 0.0, %v369
        %v372 = vsub.f32 0.0, %v370
        %v373 = vmul.f32 %v371, 1.442695
        %v374 = vpow.pop %v373
        %v375 = vmul.f32 %v372, 1.442695
        %v376 = vpow.pop %v375
        %v377 = vmul.f32 %v374, %v374
        %v378 = vmul.f32 %v376, %v376
        %v379 = vadd.f32 %v377, 1.0
        %v380 = vadd.f32 %v378, 1.0
        %v381 = vrcp.pop %v379
        %v382 = vrcp.pop %v380
        %v383 = vmul.f32 %v379, %v381
        %v384 = vmul.f32 %v380, %v382
        %v385 = vsub.f32 2.0, %v383
        %v386 = vsub.f32 2.0, %v384
        %v387 = vmul.f32 %v381, %v385
        %v388 = vmul.f32 %v382, %v386
        %v389 = vmul.f32 %v374, 2.0
        %v390 = vmul.f32 %v376, 2.0
        %v391 = vmul.f32 %v389, %v387
        %v392 = vmul.f32 %v390, %v388
        %s393 = scalar_lea.vmem %s154, 112 [#allocation5]
        %394 = vst [vmem:[%s393] sm:$0xff] %v391
        %395 = vst [vmem:[%s393 + $0x8] sm:$0xff] %v392
        %v396 = vadd.f32 %v218, -1.1111112
        %v397 = vadd.f32 %v219, -1.1111112
        %v398 = vand.u32 2147483647, %v396
        %v399 = vand.u32 2147483647, %v397
        %v400 = vsub.f32 0.0, %v398
        %v401 = vsub.f32 0.0, %v399
        %v402 = vmul.f32 %v400, 1.442695
        %v403 = vpow.pop %v402
        %v404 = vmul.f32 %v401, 1.442695
        %v405 = vpow.pop %v404
        %v406 = vmul.f32 %v403, %v403
        %v407 = vmul.f32 %v405, %v405
        %v408 = vadd.f32 %v406, 1.0
        %v409 = vadd.f32 %v407, 1.0
        %v410 = vrcp.pop %v408
        %v411 = vrcp.pop %v409
        %v412 = vmul.f32 %v408, %v410
        %v413 = vmul.f32 %v409, %v411
        %v414 = vsub.f32 2.0, %v412
        %v415 = vsub.f32 2.0, %v413
        %v416 = vmul.f32 %v410, %v414
        %v417 = vmul.f32 %v411, %v415
        %v418 = vmul.f32 %v403, 2.0
        %v419 = vmul.f32 %v405, 2.0
        %v420 = vmul.f32 %v418, %v416
        %v421 = vmul.f32 %v419, %v417
        %s422 = scalar_lea.vmem %s154, 128 [#allocation5]
        %423 = vst [vmem:[%s422] sm:$0xff] %v420
        %424 = vst [vmem:[%s422 + $0x8] sm:$0xff] %v421
        %v425 = vadd.f32 %v159, -2.7777777
        %v426 = vadd.f32 %v160, -2.7777777
        %v427 = vand.u32 2147483647, %v425
        %v428 = vand.u32 2147483647, %v426
        %v429 = vsub.f32 0.0, %v427
        %v430 = vsub.f32 0.0, %v428
        %v431 = vmul.f32 %v429, 1.442695
        %v432 = vpow.pop %v431
        %v433 = vmul.f32 %v430, 1.442695
        %v434 = vpow.pop %v433
        %v435 = vmul.f32 %v432, %v432
        %v436 = vmul.f32 %v434, %v434
        %v437 = vadd.f32 %v435, 1.0
        %v438 = vadd.f32 %v436, 1.0
        %v439 = vrcp.pop %v437
        %v440 = vrcp.pop %v438
        %v441 = vmul.f32 %v437, %v439
        %v442 = vmul.f32 %v438, %v440
        %v443 = vsub.f32 2.0, %v441
        %v444 = vsub.f32 2.0, %v442
        %v445 = vmul.f32 %v439, %v443
        %v446 = vmul.f32 %v440, %v444
        %v447 = vmul.f32 %v432, 2.0
        %v448 = vmul.f32 %v434, 2.0
        %v449 = vmul.f32 %v447, %v445
        %v450 = vmul.f32 %v448, %v446
        %s451 = scalar_lea.vmem %s154, 144 [#allocation5]
        %452 = vst [vmem:[%s451] sm:$0xff] %v449
        %453 = vst [vmem:[%s451 + $0x8] sm:$0xff] %v450
        %v454 = vadd.f32 %v159, -5.5555553
        %v455 = vadd.f32 %v160, -5.5555553
        %v456 = vand.u32 2147483647, %v454
        %v457 = vand.u32 2147483647, %v455
        %v458 = vsub.f32 0.0, %v456
        %v459 = vsub.f32 0.0, %v457
        %v460 = vmul.f32 %v458, 1.442695
        %v461 = vpow.pop %v460
        %v462 = vmul.f32 %v459, 1.442695
        %v463 = vpow.pop %v462
        %v464 = vmul.f32 %v461, %v461
        %v465 = vmul.f32 %v463, %v463
        %v466 = vadd.f32 %v464, 1.0
        %v467 = vadd.f32 %v465, 1.0
        %v468 = vrcp.pop %v466
        %v469 = vrcp.pop %v467
        %v470 = vmul.f32 %v466, %v468
        %v471 = vmul.f32 %v467, %v469
        %v472 = vsub.f32 2.0, %v470
        %v473 = vsub.f32 2.0, %v471
        %v474 = vmul.f32 %v468, %v472
        %v475 = vmul.f32 %v469, %v473
        %v476 = vmul.f32 %v461, 2.0
        %v477 = vmul.f32 %v463, 2.0
        %v478 = vmul.f32 %v476, %v474
        %v479 = vmul.f32 %v477, %v475
        %s480 = scalar_lea.vmem %s154, 160 [#allocation5]
        %481 = vst [vmem:[%s480] sm:$0xff] %v478
        %482 = vst [vmem:[%s480 + $0x8] sm:$0xff] %v479
        %s483 = sand.u32 %s68, 1
        %s484 = scalar_lea.sflag [#allocation4], %s483
        %s485 = sand.u32 %s68, 1
        %s486 = smul.addr %s485, 176
        %s487 = scalar_lea.vmem [#allocation5], %s486
        // Predicated region
        $region29: #{tpu_custom_call.1} parent=23 // pred_check
          %p488 = pneg %p78
        $region30: #{tpu_custom_call.1} parent=23 // pred_check_branch
          %490 = sbr.rel (%p488) target = $region32
        $region31: #{tpu_custom_call.1} parent=23 // pred_region
          %s491 = smul.u32 2, %s23
          %493 = vsyncadd %s484, 0
          %s494 = smul.addr %s22, 22
          %s495 = sadd.s32 %s491, %s494
          %s496 = smul.addr %s495, 8
          %s497 = scalar_lea.hbm %s1, %s496
          %s498 = sshll.u32 %s487, 4
          %s499 = int_to_ptr.vmem [resolvable:$true] %s498
          %s500 = sshll.u32 %s497, 4
          %s501 = int_to_ptr.hbm [resolvable:$true] %s500
          %506 = dma.vmem_to_hbm [thread:$0]  %s499, 2816, %s501, %s484, 128, 128, 8
        $region32: #{tpu_custom_call.1} parent=23 // pred_fallthru
          _
      $region24: #{tpu_custom_call.1} parent=5 // pred_fallthru
        _
      %p507 = scmp.le.s32.totalorder 2, %s13
      // Predicated region
      $region33: #{tpu_custom_call.1} parent=5 // pred_check
        %p508 = pneg %p507
      $region34: #{tpu_custom_call.1} parent=5 // pred_check_branch
        %510 = sbr.rel (%p508) target = $region36
      $region35: #{tpu_custom_call.1} parent=5 // pred_region
        %s511 = ssub.s32 %s13, 2
        // Predicated region
        $region37: #{tpu_custom_call.1} parent=35 // pred_check
          %p512 = pneg %p84
        $region38: #{tpu_custom_call.1} parent=35 // pred_check_branch
          %514 = sbr.rel (%p512) target = $region40
        $region39: #{tpu_custom_call.1} parent=35 // pred_region
          %s515 = sand.u32 %s69, 1
          %s516 = scalar_lea.sflag [#allocation4], %s515
          %s517 = sand.u32 %s69, 1
          %s518 = smul.addr %s517, 176
          %s519 = scalar_lea.vmem [#allocation5], %s518
          %521 = dma.done %s516, 2816
        $region40: #{tpu_custom_call.1} parent=35 // pred_fallthru
          _
      $region36: #{tpu_custom_call.1} parent=5 // pred_fallthru
        _
    $region6: #{tpu_custom_call.1} parent=1 // loop_footer
      %s17 = sadd.s32 1, %s13
    $region7: #{tpu_custom_call.1} parent=1 // loop_footer_branch
      %12 = sbr.rel target = $region3
    $region8: #{tpu_custom_call.1} parent=1 // loop_exit
      _
    %522 = vsyncpa [#allocation3], 1
    %s523 = scalar_lea.sflag [#allocation3], 1
    %524 = vsyncpa %s523, 1
    %525 = vsyncpa [#allocation4], 1
    %s526 = scalar_lea.sflag [#allocation4], 1
    %527 = vsyncpa %s526, 1

</llo_original>
